<compile_context>
chip_gen: v7x
topology: tpu7x:2x2x1
jax: 0.10.0
libtpu: 0.0.40
codegen_flags: <defaults>
</compile_context>

<pallas_src>
import math

import jax
import jax.numpy as jnp
from jax.experimental import pallas as pl
from jax.experimental.pallas import tpu as pltpu


# ----------------------------------------------------------------------------
# Kernels: tiled matmul (with / without bias epilogue), f32 accumulator.
#   o[i, j] = sum_k a[i, k] @ b[k, j] (+ bias[0, j])
# ----------------------------------------------------------------------------
def _matmul_bias_kernel(a_ref, b_ref, bias_ref, o_ref, acc_ref):
    @pl.when(pl.program_id(2) == 0)
    def _():
        acc_ref[...] = jnp.zeros_like(acc_ref)

    acc_ref[...] += jnp.dot(
        a_ref[...], b_ref[...], preferred_element_type=jnp.float32
    )

    @pl.when(pl.program_id(2) == pl.num_programs(2) - 1)
    def _():
        o_ref[...] = (
            acc_ref[...] + bias_ref[...].astype(jnp.float32)
        ).astype(o_ref.dtype)


def _matmul_kernel(a_ref, b_ref, o_ref, acc_ref):
    @pl.when(pl.program_id(2) == 0)
    def _():
        acc_ref[...] = jnp.zeros_like(acc_ref)

    acc_ref[...] += jnp.dot(
        a_ref[...], b_ref[...], preferred_element_type=jnp.float32
    )

    @pl.when(pl.program_id(2) == pl.num_programs(2) - 1)
    def _():
        o_ref[...] = acc_ref[...].astype(o_ref.dtype)


def _round_up(x, m):
    return ((x + m - 1) // m) * m


def _choose_tile(dim, align, max_tile):
    """Pick (tile, padded_dim) for one block dimension.

    Preference order:
      1. dim <= max_tile  -> one full-extent block (legal even when unaligned):
         no padding, no extra HBM copy, single grid step along this axis.
      2. largest align-multiple tile <= max_tile that divides dim evenly:
         no padding.
      3. max_tile, with dim zero-padded up to a multiple of it (fallback).
    """
    if dim <= max_tile:
        return dim, dim
    for t in range(max_tile, align - 1, -align):
        if dim % t == 0:
            return t, dim
    return max_tile, _round_up(dim, max_tile)


def _pallas_matmul(a, b, bias=None, *, tm_max=512, tn_max=512, tk_max=512,
                   out_dtype=None):
    """out = a @ b (+ bias), pipelined/tiled Pallas matmul, f32 accumulation.

    a: [M, K], b: [K, N], bias: [N] or None.  Operands are only zero-padded
    when a dim must be split into multiple blocks and no evenly-dividing
    aligned tile exists; otherwise they are streamed as-is.
    """
    m, k = a.shape
    k2, n = b.shape
    assert k == k2, (a.shape, b.shape)
    out_dtype = out_dtype or a.dtype

    # tm: sublane dim of a / out  -> multiple of 8 (or full extent).
    # tk: lane dim of a, sublane dim of b -> multiple of 128 (or full extent).
    # tn: lane dim of b / bias / out -> multiple of 128 (or full extent).
    tm, mp = _choose_tile(m, 8, tm_max)
    tk, kp = _choose_tile(k, 128, tk_max)
    tn, np_ = _choose_tile(n, 128, tn_max)

    a_p = a if (mp == m and kp == k) else jnp.pad(a, ((0, mp - m), (0, kp - k)))
    b_p = b if (kp == k and np_ == n) else jnp.pad(b, ((0, kp - k), (0, np_ - n)))

    grid = (mp // tm, np_ // tn, kp // tk)
    gi, gj, gk = grid

    in_specs = [
        pl.BlockSpec((tm, tk), lambda i, j, kk: (i, kk)),   # a tile
        pl.BlockSpec((tk, tn), lambda i, j, kk: (kk, j)),   # b tile
    ]
    operands = [a_p, b_p]
    kernel = _matmul_kernel
    bias_bytes = 0
    if bias is not None:
        bias2d = bias.reshape(1, n)
        if np_ != n:
            bias2d = jnp.pad(bias2d, ((0, 0), (0, np_ - n)))
        in_specs.append(pl.BlockSpec((1, tn), lambda i, j, kk: (0, j)))
        operands.append(bias2d)
        kernel = _matmul_bias_kernel
        bias_bytes = bias2d.dtype.itemsize * np_ * gi

    # Advisory cost: include operand re-streaming across the grid.
    cost = pl.CostEstimate(
        flops=2 * mp * np_ * kp,
        transcendentals=0,
        bytes_accessed=(
            a_p.dtype.itemsize * mp * kp * gj       # a re-read per j block
            + b_p.dtype.itemsize * kp * np_ * gi    # b re-read per i block
            + jnp.dtype(out_dtype).itemsize * mp * np_
            + bias_bytes
        ),
    )

    # TODO(synk): sweep pipeline_mode=pl.Buffered(3) on the a-operand spec of
    # the HBM-bound adj matmul; default double-buffering kept here.
    out_p = pl.pallas_call(
        kernel,
        out_shape=jax.ShapeDtypeStruct((mp, np_), out_dtype),
        grid_spec=pltpu.PrefetchScalarGridSpec(
            num_scalar_prefetch=0,
            grid=grid,
            in_specs=in_specs,
            out_specs=pl.BlockSpec((tm, tn), lambda i, j, kk: (i, j)),
            scratch_shapes=[pltpu.VMEM((tm, tn), jnp.float32)],
        ),
        compiler_params=pltpu.CompilerParams(
            # Row/col blocks are independent -> megacore-shardable on v7x;
            # the K-reduction stays sequential and last.
            dimension_semantics=("parallel", "parallel", "arbitrary"),
            # 48 MiB: plenty for double-buffered 512-tiles, inside v7x's
            # 64 MiB physical VMEM per TensorCore (v5e/v6e have 128 MiB).
            vmem_limit_bytes=48 * 1024 * 1024,
        ),
        cost_estimate=cost,
    )(*operands)

    if mp == m and np_ == n:
        return out_p
    return out_p[:m, :n]


def graph_convolution(x, adj, weight, bias=None):
    """Pallas GCN forward: adj @ (x @ weight) + bias (assoc. order by cost)."""
    n, f_in = x.shape
    f_in2, f_out = weight.shape
    assert f_in == f_in2
    assert adj.shape == (n, n)
    out_dtype = x.dtype

    if f_out <= f_in:
        # support = x @ w (the smaller intermediate), emitted bf16 so the
        # HBM-bound adj matmul reads half the bytes for its B operand.
        support = _pallas_matmul(x, weight, out_dtype=jnp.bfloat16)
        # adj @ support: tn covers the whole (padded) F_out -> the N x N
        # adjacency streams from HBM exactly once; big tm/tk.
        out = _pallas_matmul(
            adj, support, bias,
            tm_max=512, tk_max=512,
            tn_max=max(512, min(_round_up(f_out, 128), 2048)),
            out_dtype=out_dtype,
        )
    else:
        # (adj @ x) is the smaller intermediate; adjacency streamed once.
        ax = _pallas_matmul(
            adj, x,
            tm_max=512, tk_max=512,
            tn_max=max(512, min(_round_up(f_in, 128), 2048)),
            out_dtype=jnp.bfloat16,
        )
        out = _pallas_matmul(ax, weight, bias, out_dtype=out_dtype)
    return out


if __name__ == "__main__":
    key = jax.random.PRNGKey(0)

    def make_case(key, n, f_in, f_out):
        k_x, k_adj, k_w, k_b = jax.random.split(key, 4)
        # reset_parameters(): uniform(-stdv, stdv), stdv = 1/sqrt(out_features)
        stdv = 1.0 / math.sqrt(f_out)
        weight = jax.random.uniform(
            k_w, (f_in, f_out), minval=-stdv, maxval=stdv, dtype=jnp.float32
        )
        bias = jax.random.uniform(
            k_b, (f_out,), minval=-stdv, maxval=stdv, dtype=jnp.float32
        )
        x = jax.random.normal(k_x, (n, f_in), dtype=jnp.float32)
        adj = jax.random.uniform(k_adj, (n, n), dtype=jnp.float32)
        return x, adj, weight, bias

    gcn = jax.jit(graph_convolution)

    ok = True
    k1, k2 = jax.random.split(key)
    # Case 1: F_out <= F_in path.  Case 2: F_out > F_in path with
    # non-tile-aligned dims (exercises full-extent unaligned blocks, no pad).
    for ks, (n, f_in, f_out) in ((k1, (16, 32, 32)), (k2, (24, 16, 48))):
        x, adj, weight, bias = make_case(ks, n, f_in, f_out)

        out = jax.block_until_ready(gcn(x, adj, weight, bias))

        with jax.default_matmul_precision("highest"):
            ref = adj @ (x @ weight) + bias

        assert out.shape == (n, f_out)
        # Tolerance loosened for the bf16 intermediate (expected, not a bug).
        if not jnp.allclose(out, ref, atol=5e-2, rtol=5e-2):
            ok = False

    if ok:
        print("KERNEL_OK")
</pallas_src>

<mosaic_0001>
module attributes {stable_mosaic.version = 11 : i64} {
  func.func @_matmul_kernel(%arg0: i32, %arg1: i32, %arg2: i32, %arg3: memref<16x32xf32, #tpu.memory_space<vmem>>, %arg4: memref<32x32xf32, #tpu.memory_space<vmem>>, %arg5: memref<16x32xbf16, #tpu.memory_space<vmem>>, %arg6: memref<16x32xf32, #tpu.memory_space<vmem>>) attributes {dimension_semantics = [#tpu.dimension_semantics<parallel>, #tpu.dimension_semantics<parallel>, #tpu.dimension_semantics<arbitrary>], iteration_bounds = array<i64: 1, 1, 1>, scalar_prefetch = 0 : i64, scratch_operands = 1 : i64, tpu.core_type = #tpu.core_type<tc>, window_params = [{transform_indices = @transform_0, window_bounds = array<i64: 16, 32>}, {transform_indices = @transform_1, window_bounds = array<i64: 32, 32>}, {transform_indices = @transform_2, window_bounds = array<i64: 16, 32>}]} {
    %c0_i32 = arith.constant 0 : i32
    %0 = arith.cmpi eq, %arg2, %c0_i32 : i32
    %1 = arith.extui %0 : i1 to i32
    %c0_i32_0 = arith.constant 0 : i32
    %2 = arith.cmpi ne, %1, %c0_i32_0 : i32
    scf.if %2 {
      %cst_10 = arith.constant 0.000000e+00 : f32
      %12 = vector.broadcast %cst_10 : f32 to vector<16x32xf32>
      %c0_11 = arith.constant 0 : index
      %c0_12 = arith.constant 0 : index
      %13 = vector.load %arg6[%c0_11, %c0_12] : memref<16x32xf32, #tpu.memory_space<vmem>>, vector<16x32xf32>
      tpu.vector_store %arg6[%c0_11, %c0_12], %12 {strides = array<i32>} : memref<16x32xf32, #tpu.memory_space<vmem>>, vector<16x32xf32>,
    } else {
    }
    %c0 = arith.constant 0 : index
    %c0_1 = arith.constant 0 : index
    %3 = vector.load %arg6[%c0, %c0_1] : memref<16x32xf32, #tpu.memory_space<vmem>>, vector<16x32xf32>
    %c0_2 = arith.constant 0 : index
    %c0_3 = arith.constant 0 : index
    %4 = vector.load %arg3[%c0_2, %c0_3] : memref<16x32xf32, #tpu.memory_space<vmem>>, vector<16x32xf32>
    %c0_4 = arith.constant 0 : index
    %c0_5 = arith.constant 0 : index
    %5 = vector.load %arg4[%c0_4, %c0_5] : memref<32x32xf32, #tpu.memory_space<vmem>>, vector<32x32xf32>
    %cst = arith.constant dense<0.000000e+00> : vector<16x32xf32>
    %6 = tpu.matmul %4, %5, %cst {dimension_numbers = #tpu.dot_dimension_numbers<[1], [0], [0], [1], [0, 0, 1, 1], [], []>} : vector<16x32xf32>, vector<32x32xf32>, vector<16x32xf32> -> vector<16x32xf32>
    %7 = arith.addf %3, %6 : vector<16x32xf32>
    %c0_6 = arith.constant 0 : index
    %c0_7 = arith.constant 0 : index
    %8 = vector.load %arg6[%c0_6, %c0_7] : memref<16x32xf32, #tpu.memory_space<vmem>>, vector<16x32xf32>
    tpu.vector_store %arg6[%c0_6, %c0_7], %7 {strides = array<i32>} : memref<16x32xf32, #tpu.memory_space<vmem>>, vector<16x32xf32>,
    %c0_i32_8 = arith.constant 0 : i32
    %9 = arith.cmpi eq, %arg2, %c0_i32_8 : i32
    %10 = arith.extui %9 : i1 to i32
    %c0_i32_9 = arith.constant 0 : i32
    %11 = arith.cmpi ne, %10, %c0_i32_9 : i32
    scf.if %11 {
      %c0_10 = arith.constant 0 : index
      %c0_11 = arith.constant 0 : index
      %12 = vector.load %arg6[%c0_10, %c0_11] : memref<16x32xf32, #tpu.memory_space<vmem>>, vector<16x32xf32>
      %13 = arith.truncf %12 : vector<16x32xf32> to vector<16x32xbf16>
      %c0_12 = arith.constant 0 : index
      %c0_13 = arith.constant 0 : index
      %14 = vector.load %arg5[%c0_12, %c0_13] : memref<16x32xbf16, #tpu.memory_space<vmem>>, vector<16x32xbf16>
      tpu.vector_store %arg5[%c0_12, %c0_13], %13 {strides = array<i32>} : memref<16x32xbf16, #tpu.memory_space<vmem>>, vector<16x32xbf16>,
    } else {
    }
    return
  }
  func.func @transform_0(%arg0: i32, %arg1: i32, %arg2: i32) -> (i32, i32) {
    %c0_i32 = arith.constant 0 : i32
    return %arg0, %arg2 : i32, i32
  }
  func.func @transform_1(%arg0: i32, %arg1: i32, %arg2: i32) -> (i32, i32) {
    %c0_i32 = arith.constant 0 : i32
    return %arg2, %arg1 : i32, i32
  }
  func.func @transform_2(%arg0: i32, %arg1: i32, %arg2: i32) -> (i32, i32) {
    %c0_i32 = arith.constant 0 : i32
    return %arg0, %arg1 : i32, i32
  }
}

module attributes {stable_mosaic.version = 11 : i64} {
  func.func @_matmul_bias_kernel(%arg0: i32, %arg1: i32, %arg2: i32, %arg3: memref<16x16xf32, #tpu.memory_space<vmem>>, %arg4: memref<16x32xbf16, #tpu.memory_space<vmem>>, %arg5: memref<1x32xf32, #tpu.memory_space<vmem>>, %arg6: memref<16x32xf32, #tpu.memory_space<vmem>>, %arg7: memref<16x32xf32, #tpu.memory_space<vmem>>) attributes {dimension_semantics = [#tpu.dimension_semantics<parallel>, #tpu.dimension_semantics<parallel>, #tpu.dimension_semantics<arbitrary>], iteration_bounds = array<i64: 1, 1, 1>, scalar_prefetch = 0 : i64, scratch_operands = 1 : i64, tpu.core_type = #tpu.core_type<tc>, window_params = [{transform_indices = @transform_0, window_bounds = array<i64: 16, 16>}, {transform_indices = @transform_1, window_bounds = array<i64: 16, 32>}, {transform_indices = @transform_2, window_bounds = array<i64: 1, 32>}, {transform_indices = @transform_3, window_bounds = array<i64: 16, 32>}]} {
    %c0_i32 = arith.constant 0 : i32
    %0 = arith.cmpi eq, %arg2, %c0_i32 : i32
    %1 = arith.extui %0 : i1 to i32
    %c0_i32_0 = arith.constant 0 : i32
    %2 = arith.cmpi ne, %1, %c0_i32_0 : i32
    scf.if %2 {
      %cst_10 = arith.constant 0.000000e+00 : f32
      %12 = vector.broadcast %cst_10 : f32 to vector<16x32xf32>
      %c0_11 = arith.constant 0 : index
      %c0_12 = arith.constant 0 : index
      %13 = vector.load %arg7[%c0_11, %c0_12] : memref<16x32xf32, #tpu.memory_space<vmem>>, vector<16x32xf32>
      tpu.vector_store %arg7[%c0_11, %c0_12], %12 {strides = array<i32>} : memref<16x32xf32, #tpu.memory_space<vmem>>, vector<16x32xf32>,
    } else {
    }
    %c0 = arith.constant 0 : index
    %c0_1 = arith.constant 0 : index
    %3 = vector.load %arg7[%c0, %c0_1] : memref<16x32xf32, #tpu.memory_space<vmem>>, vector<16x32xf32>
    %c0_2 = arith.constant 0 : index
    %c0_3 = arith.constant 0 : index
    %4 = vector.load %arg3[%c0_2, %c0_3] : memref<16x16xf32, #tpu.memory_space<vmem>>, vector<16x16xf32>
    %c0_4 = arith.constant 0 : index
    %c0_5 = arith.constant 0 : index
    %5 = vector.load %arg4[%c0_4, %c0_5] : memref<16x32xbf16, #tpu.memory_space<vmem>>, vector<16x32xbf16>
    %cst = arith.constant dense<0.000000e+00> : vector<16x32xf32>
    %6 = tpu.matmul %4, %5, %cst {dimension_numbers = #tpu.dot_dimension_numbers<[1], [0], [0], [1], [0, 0, 1, 1], [], []>} : vector<16x16xf32>, vector<16x32xbf16>, vector<16x32xf32> -> vector<16x32xf32>
    %7 = arith.addf %3, %6 : vector<16x32xf32>
    %c0_6 = arith.constant 0 : index
    %c0_7 = arith.constant 0 : index
    %8 = vector.load %arg7[%c0_6, %c0_7] : memref<16x32xf32, #tpu.memory_space<vmem>>, vector<16x32xf32>
    tpu.vector_store %arg7[%c0_6, %c0_7], %7 {strides = array<i32>} : memref<16x32xf32, #tpu.memory_space<vmem>>, vector<16x32xf32>,
    %c0_i32_8 = arith.constant 0 : i32
    %9 = arith.cmpi eq, %arg2, %c0_i32_8 : i32
    %10 = arith.extui %9 : i1 to i32
    %c0_i32_9 = arith.constant 0 : i32
    %11 = arith.cmpi ne, %10, %c0_i32_9 : i32
    scf.if %11 {
      %c0_10 = arith.constant 0 : index
      %c0_11 = arith.constant 0 : index
      %12 = vector.load %arg7[%c0_10, %c0_11] : memref<16x32xf32, #tpu.memory_space<vmem>>, vector<16x32xf32>
      %c0_12 = arith.constant 0 : index
      %c0_13 = arith.constant 0 : index
      %13 = vector.load %arg5[%c0_12, %c0_13] : memref<1x32xf32, #tpu.memory_space<vmem>>, vector<1x32xf32>
      %14 = vector.broadcast %13 : vector<1x32xf32> to vector<16x32xf32>
      %15 = arith.addf %12, %14 : vector<16x32xf32>
      %c0_14 = arith.constant 0 : index
      %c0_15 = arith.constant 0 : index
      %16 = vector.load %arg6[%c0_14, %c0_15] : memref<16x32xf32, #tpu.memory_space<vmem>>, vector<16x32xf32>
      tpu.vector_store %arg6[%c0_14, %c0_15], %15 {strides = array<i32>} : memref<16x32xf32, #tpu.memory_space<vmem>>, vector<16x32xf32>,
    } else {
    }
    return
  }
  func.func @transform_0(%arg0: i32, %arg1: i32, %arg2: i32) -> (i32, i32) {
    %c0_i32 = arith.constant 0 : i32
    return %arg0, %arg2 : i32, i32
  }
  func.func @transform_1(%arg0: i32, %arg1: i32, %arg2: i32) -> (i32, i32) {
    %c0_i32 = arith.constant 0 : i32
    return %arg2, %arg1 : i32, i32
  }
  func.func @transform_2(%arg0: i32, %arg1: i32, %arg2: i32) -> (i32, i32) {
    %c0_i32 = arith.constant 0 : i32
    %c0_i32_0 = arith.constant 0 : i32
    return %c0_i32, %arg1 : i32, i32
  }
  func.func @transform_3(%arg0: i32, %arg1: i32, %arg2: i32) -> (i32, i32) {
    %c0_i32 = arith.constant 0 : i32
    return %arg0, %arg1 : i32, i32
  }
}

</mosaic_0001>

<llo_original>
// kernel: graph_convolution.2
$region0: #{graph_convolution.2}
  #allocation0 [shape = 'u32[]', space=smem, size = 0x4, offset = 0x4, fixed_abs, tag = 'smem constant byte address 0x4 - core index']
  #allocation1 [shape = 'u32[144,128]{1,0:T(1,128)}', space=vmem, size = 0x12000, scoped, tag = 'internal scratch']
  #allocation2 [shape = 'f32[16,32]{1,0:T(8,128)}', space=vmem, size = 0x2000, scoped, tag = 'scratch operand']
  %s0 = inlined_call_operand.hbm [shape: f32[16,32], index: 0, kind: input, shape index: {}]
  %s1 = inlined_call_operand.hbm [shape: f32[32,32], index: 1, kind: input, shape index: {}]
  %s2 = inlined_call_operand.vmem [shape: bf16[16,32], index: 2, kind: output, shape index: {}]
  %s3 = sld [smem:[#allocation0]]
  $region34: #{graph_convolution.2} parent=0
    _
  %s5 = ssub.s32 1, %s3
  %s6 = scalar_select 0, %s5, %s3
  $region1: #{graph_convolution.2} parent=0
    #allocation3 [shape = 'u8[8192]{0}', space=vmem, size = 0x2000, scoped, tag = 'input window, operand 0, single buffered']
    #allocation4 [shape = 's32[1]{0}', space=sflag, size = 0x4, scoped, tag = 'scoped memory for graph_convolution.2']
    #allocation5 [shape = 'u8[16384]{0}', space=vmem, size = 0x4000, scoped, tag = 'input window, operand 1, single buffered']
    #allocation6 [shape = 's32[1]{0}', space=sflag, size = 0x4, scoped, tag = 'scoped memory for graph_convolution.2']
    %7 = vsyncpa [#allocation4], 0
    %8 = vsyncpa [#allocation6], 0
    // Predicated region
    $region2: #{graph_convolution.2} parent=1 // pred_check
      _
    $region3: #{graph_convolution.2} parent=1 // pred_check_branch
      %10 = sbr.rel (0) target = $region5
    $region4: #{graph_convolution.2} parent=1 // pred_region
      %s12 = ssub.s32 256, 256
      %13 = vsyncadd [#allocation4], %s12
      %s14 = sshll.u32 [#allocation3], 4
      %s15 = int_to_ptr.vmem [resolvable:$true] %s14
      %20 = dma.hbm_to_vmem [thread:$0]  %s0, 256, %s15, [#allocation4], 128, 128, 8
    $region5: #{graph_convolution.2} parent=1 // pred_fallthru
      _
    // Predicated region
    $region6: #{graph_convolution.2} parent=1 // pred_check
      _
    $region7: #{graph_convolution.2} parent=1 // pred_check_branch
      %22 = sbr.rel (0) target = $region9
    $region8: #{graph_convolution.2} parent=1 // pred_region
      %s24 = ssub.s32 512, 512
      %25 = vsyncadd [#allocation6], %s24
      %s26 = sshll.u32 [#allocation5], 4
      %s27 = int_to_ptr.vmem [resolvable:$true] %s26
      %32 = dma.hbm_to_vmem [thread:$0]  %s1, 512, %s27, [#allocation6], 128, 128, 8
    $region9: #{graph_convolution.2} parent=1 // pred_fallthru
      _
    // Predicated region
    $region10: #{graph_convolution.2} parent=1 // pred_check
      _
    $region11: #{graph_convolution.2} parent=1 // pred_check_branch
      %34 = sbr.rel (0) target = $region13
    $region12: #{graph_convolution.2} parent=1 // pred_region
      %35 = dma.done [#allocation4], 256
    $region13: #{graph_convolution.2} parent=1 // pred_fallthru
      _
    // Predicated region
    $region14: #{graph_convolution.2} parent=1 // pred_check
      _
    $region15: #{graph_convolution.2} parent=1 // pred_check_branch
      %37 = sbr.rel (0) target = $region17
    $region16: #{graph_convolution.2} parent=1 // pred_region
      %38 = dma.done [#allocation6], 512
    $region17: #{graph_convolution.2} parent=1 // pred_fallthru
      _
    %p39 = scmp.eq.s32.totalorder 0, 0
    // Predicated region
    $region18: #{graph_convolution.2} parent=1 // pred_check
      %p40 = pneg %p39
    $region19: #{graph_convolution.2} parent=1 // pred_check_branch
      %42 = sbr.rel (%p40) target = $region21
    $region20: #{graph_convolution.2} parent=1 // pred_region
      %vm43 = vcmask 261120
      %44 = vst.msk [vmem:[#allocation2] sm:$0xff] %vm43, 0.0
      %45 = vst.msk [vmem:[#allocation2 + $0x8] sm:$0xff] %vm43, 0.0
    $region21: #{graph_convolution.2} parent=1 // pred_fallthru
      _
    %v46 = vld [vmem:[#allocation2] sm:$0xff]
    %v47 = vld [vmem:[#allocation2 + $0x8] sm:$0xff]
    %v48 = vld [vmem:[#allocation3] sm:$0xff]
    %v49 = vld [vmem:[#allocation3 + $0x8] sm:$0xff]
    %v50 = vld [vmem:[#allocation5] sm:$0xff]
    %v51 = vld [vmem:[#allocation5 + $0x8] sm:$0xff]
    %v52 = vld [vmem:[#allocation5 + $0x10] sm:$0xff]
    %v53 = vld [vmem:[#allocation5 + $0x18] sm:$0xff]
    %vm54 = vcmask 261120
    %v56 = vsel %vm54, %v48, 0
    %v59 = vsel %vm54, %v49, 0
    %61 = vmatprep.subr.mxu0 0.0
    %62 = vmatpush1.msra.mxu0 %v50
    %63 = vmatprep.subr.mxu0 0.0
    %64 = vmatpush1.msra.mxu0 %v51
    %65 = vmatprep.subr.mxu0 0.0
    %66 = vmatpush1.msra.mxu0 %v52
    %67 = vmatprep.subr.mxu0 0.0
    %68 = vmatpush1.msra.mxu0 %v53
    %69 = vmatprep.subr.mxu0 0.0
    %70 = vmatpush1.msra.mxu0 0.0
    %71 = vmatprep.subr.mxu0 0.0
    %72 = vmatpush1.msra.mxu0 0.0
    %73 = vmatprep.subr.mxu0 0.0
    %74 = vmatpush1.msra.mxu0 0.0
    %75 = vmatprep.subr.mxu0 0.0
    %76 = vmatpush1.msra.mxu0 0.0
    %77 = vmatprep.subr.mxu0 0.0
    %78 = vmatpush1.msra.mxu0 0.0
    %79 = vmatprep.subr.mxu0 0.0
    %80 = vmatpush1.msra.mxu0 0.0
    %81 = vmatprep.subr.mxu0 0.0
    %82 = vmatpush1.msra.mxu0 0.0
    %83 = vmatprep.subr.mxu0 0.0
    %84 = vmatpush1.msra.mxu0 0.0
    %85 = vmatprep.subr.mxu0 0.0
    %86 = vmatpush1.msra.mxu0 0.0
    %87 = vmatprep.subr.mxu0 0.0
    %88 = vmatpush1.msra.mxu0 0.0
    %89 = vmatprep.subr.mxu0 0.0
    %90 = vmatpush1.msra.mxu0 0.0
    %91 = vmatprep.subr.mxu0 0.0
    %92 = vmatpush1.msra.mxu0 0.0
    %93 = vmatprep.subr.mxu0 0.0
    %94 = vmatpush1.msra.mxu0 0.0
    %95 = vmatprep.subr.mxu0 0.0
    %96 = vmatpush1.msra.mxu0 0.0
    %97 = vmatprep.subr.mxu0 0.0
    %98 = vmatpush1.msra.mxu0 0.0
    %99 = vmatprep.subr.mxu0 0.0
    %100 = vmatpush1.msra.mxu0 0.0
    %101 = vmatprep.subr.mxu0 0.0
    %102 = vmatpush1.msra.mxu0 0.0
    %103 = vmatprep.subr.mxu0 0.0
    %104 = vmatpush1.msra.mxu0 0.0
    %105 = vmatprep.subr.mxu0 0.0
    %106 = vmatpush1.msra.mxu0 0.0
    %107 = vmatprep.subr.mxu0 0.0
    %108 = vmatpush1.msra.mxu0 0.0
    %109 = vmatprep.subr.mxu0 0.0
    %110 = vmatpush1.msra.mxu0 0.0
    %111 = vmatprep.subr.mxu0 0.0
    %112 = vmatpush1.msra.mxu0 0.0
    %113 = vmatprep.subr.mxu0 0.0
    %114 = vmatpush1.msra.mxu0 0.0
    %115 = vmatprep.subr.mxu0 0.0
    %116 = vmatpush1.msra.mxu0 0.0
    %117 = vmatprep.subr.mxu0 0.0
    %118 = vmatpush1.msra.mxu0 0.0
    %119 = vmatprep.subr.mxu0 0.0
    %120 = vmatpush1.msra.mxu0 0.0
    %121 = vmatprep.subr.mxu0 0.0
    %122 = vmatpush1.msra.mxu0 0.0
    %123 = vmatprep.subr.mxu0 0.0
    %124 = vmatpush1.msra.mxu0 0.0
    %125 = vmatprep.mubr.f32.mxu0 0.0
    %126 = vmatmul.mubr.f32.gmra.mrb[0].mxu0 %v56
    %v127 = vpop.f32.mrb[0].mxu0
    %v128 = vadd.f32 0.0, %v127
    %v129 = vpop.f32.mrb[0].mxu0
    %130 = vmatprep.mubr.f32.mxu0 0.0
    %131 = vmatmul.mubr.f32.gmra.mrb[0].mxu0 %v59
    %v132 = vpop.f32.mrb[0].mxu0
    %v133 = vadd.f32 0.0, %v132
    %v134 = vpop.f32.mrb[0].mxu0
    %135 = vdwg.mxu0
    %v136 = vadd.f32 %v46, %v128
    %v137 = vadd.f32 %v47, %v133
    %138 = vst.msk [vmem:[#allocation2] sm:$0xff] %vm54, %v136
    %139 = vst.msk [vmem:[#allocation2 + $0x8] sm:$0xff] %vm54, %v137
    // Predicated region
    $region22: #{graph_convolution.2} parent=1 // pred_check
      %p140 = pneg %p39
    $region23: #{graph_convolution.2} parent=1 // pred_check_branch
      %142 = sbr.rel (%p140) target = $region25
    $region24: #{graph_convolution.2} parent=1 // pred_region
      %v143 = vld [vmem:[#allocation2] sm:$0xff]
      %v144 = vld [vmem:[#allocation2 + $0x8] sm:$0xff]
      %v145 = vpack.c.bf16 %v144, %v143
      %v147 = vunpack.c.l.b16 %v145
      %v148 = vunpack.c.h.b16 %v145
      %v149 = vpack.c.b16 %v147, %v147
      %v150 = vpack.c.b16 %v148, %v148
      %vm153 = vcmask 257024
      %154 = vst.msk [vmem:[%s2] sm:$0xf] %vm153, %v149
      %155 = vst.msk [vmem:[%s2 + $0x4] sm:$0xf] %vm153, %v150
    $region25: #{graph_convolution.2} parent=1 // pred_fallthru
      _
    // Predicated region
    $region26: #{graph_convolution.2} parent=1 // pred_check
      _
    $region27: #{graph_convolution.2} parent=1 // pred_check_branch
      %157 = sbr.rel (0) target = $region29
    $region28: #{graph_convolution.2} parent=1 // pred_region
      _
    $region29: #{graph_convolution.2} parent=1 // pred_fallthru
      _
    // Predicated region
    $region30: #{graph_convolution.2} parent=1 // pred_check
      _
    $region31: #{graph_convolution.2} parent=1 // pred_check_branch
      %159 = sbr.rel (0) target = $region33
    $region32: #{graph_convolution.2} parent=1 // pred_region
      _
    $region33: #{graph_convolution.2} parent=1 // pred_fallthru
      _
    %160 = vsyncpa [#allocation4], 1
    %161 = vsyncpa [#allocation6], 1

// kernel: graph_convolution.3
$region0: #{graph_convolution.3}
  #allocation0 [shape = 'u32[]', space=smem, size = 0x4, offset = 0x4, fixed_abs, tag = 'smem constant byte address 0x4 - core index']
  #allocation1 [shape = 'u32[144,128]{1,0:T(1,128)}', space=vmem, size = 0x12000, scoped, tag = 'internal scratch']
  #allocation2 [shape = 'f32[16,32]{1,0:T(8,128)}', space=vmem, size = 0x2000, scoped, tag = 'scratch operand']
  %s0 = inlined_call_operand.vmem [shape: f32[16,16], index: 0, kind: input, shape index: {}]
  %s1 = inlined_call_operand.vmem [shape: bf16[16,32], index: 1, kind: input, shape index: {}]
  %s2 = inlined_call_operand.vmem [shape: f32[1,32], index: 2, kind: input, shape index: {}]
  %s3 = inlined_call_operand.hbm [shape: f32[16,32], index: 3, kind: output, shape index: {}]
  %s4 = sld [smem:[#allocation0]]
  $region30: #{graph_convolution.3} parent=0
    _
  %s6 = ssub.s32 1, %s4
  %s7 = scalar_select 0, %s6, %s4
  $region1: #{graph_convolution.3} parent=0
    #allocation3 [shape = 'u8[8192]{0}', space=vmem, size = 0x2000, scoped, tag = 'output window, operand 0, single buffered']
    #allocation4 [shape = 's32[1]{0}', space=sflag, size = 0x4, scoped, tag = 'scoped memory for graph_convolution.3']
    %8 = vsyncpa [#allocation4], 0
    // Predicated region
    $region2: #{graph_convolution.3} parent=1 // pred_check
      _
    $region3: #{graph_convolution.3} parent=1 // pred_check_branch
      %10 = sbr.rel (0) target = $region5
    $region4: #{graph_convolution.3} parent=1 // pred_region
      _
    $region5: #{graph_convolution.3} parent=1 // pred_fallthru
      _
    // Predicated region
    $region6: #{graph_convolution.3} parent=1 // pred_check
      _
    $region7: #{graph_convolution.3} parent=1 // pred_check_branch
      %12 = sbr.rel (0) target = $region9
    $region8: #{graph_convolution.3} parent=1 // pred_region
      _
    $region9: #{graph_convolution.3} parent=1 // pred_fallthru
      _
    // Predicated region
    $region10: #{graph_convolution.3} parent=1 // pred_check
      _
    $region11: #{graph_convolution.3} parent=1 // pred_check_branch
      %14 = sbr.rel (0) target = $region13
    $region12: #{graph_convolution.3} parent=1 // pred_region
      _
    $region13: #{graph_convolution.3} parent=1 // pred_fallthru
      _
    %p16 = scmp.eq.s32.totalorder 0, 0
    // Predicated region
    $region14: #{graph_convolution.3} parent=1 // pred_check
      %p17 = pneg %p16
    $region15: #{graph_convolution.3} parent=1 // pred_check_branch
      %19 = sbr.rel (%p17) target = $region17
    $region16: #{graph_convolution.3} parent=1 // pred_region
      %vm20 = vcmask 261120
      %21 = vst.msk [vmem:[#allocation2] sm:$0xff] %vm20, 0.0
      %22 = vst.msk [vmem:[#allocation2 + $0x8] sm:$0xff] %vm20, 0.0
    $region17: #{graph_convolution.3} parent=1 // pred_fallthru
      _
    %v23 = vld [vmem:[#allocation2] sm:$0xff]
    %v24 = vld [vmem:[#allocation2 + $0x8] sm:$0xff]
    %v25 = vld [vmem:[%s0] sm:$0xff]
    %v26 = vld [vmem:[%s0 + $0x8] sm:$0xff]
    %v27 = vld [vmem:[%s1] sm:$0xf]
    %v28 = vld [vmem:[%s1 + $0x4] sm:$0xf]
    %v31 = vunpack.c.l.b16 %v27
    %v32 = vunpack.c.l.b16 %v28
    %v33 = vpack.c.b16 %v32, %v31
    %vm35 = vcmask 130048
    %v37 = vsel %vm35, %v25, 0
    %v40 = vsel %vm35, %v26, 0
    %42 = vmatprep.subr.bf16.mxu0 0
    %43 = vmatpush1.bf16.msra.mxu0 %v33
    %44 = vmatprep.subr.bf16.mxu0 0
    %45 = vmatpush1.bf16.msra.mxu0 0
    %46 = vmatprep.subr.bf16.mxu0 0
    %47 = vmatpush1.bf16.msra.mxu0 0
    %48 = vmatprep.subr.bf16.mxu0 0
    %49 = vmatpush1.bf16.msra.mxu0 0
    %50 = vmatprep.subr.bf16.mxu0 0
    %51 = vmatpush1.bf16.msra.mxu0 0
    %52 = vmatprep.subr.bf16.mxu0 0
    %53 = vmatpush1.bf16.msra.mxu0 0
    %54 = vmatprep.subr.bf16.mxu0 0
    %55 = vmatpush1.bf16.msra.mxu0 0
    %56 = vmatprep.subr.bf16.mxu0 0
    %57 = vmatpush1.bf16.msra.mxu0 0
    %58 = vmatprep.subr.bf16.mxu0 0
    %59 = vmatpush1.bf16.msra.mxu0 0
    %60 = vmatprep.subr.bf16.mxu0 0
    %61 = vmatpush1.bf16.msra.mxu0 0
    %62 = vmatprep.subr.bf16.mxu0 0
    %63 = vmatpush1.bf16.msra.mxu0 0
    %64 = vmatprep.subr.bf16.mxu0 0
    %65 = vmatpush1.bf16.msra.mxu0 0
    %66 = vmatprep.subr.bf16.mxu0 0
    %67 = vmatpush1.bf16.msra.mxu0 0
    %68 = vmatprep.subr.bf16.mxu0 0
    %69 = vmatpush1.bf16.msra.mxu0 0
    %70 = vmatprep.subr.bf16.mxu0 0
    %71 = vmatpush1.bf16.msra.mxu0 0
    %72 = vmatprep.subr.bf16.mxu0 0
    %73 = vmatpush1.bf16.msra.mxu0 0
    %74 = vmatprep.mubr.f32.mxu0 0.0
    %75 = vmatmul.mubr.f32.gmra.mrb[0].mxu0 %v37
    %v76 = vpop.f32.mrb[0].mxu0
    %v77 = vadd.f32 0.0, %v76
    %v78 = vpop.f32.mrb[0].mxu0
    %79 = vmatprep.mubr.f32.mxu0 0.0
    %80 = vmatmul.mubr.f32.gmra.mrb[0].mxu0 %v40
    %v81 = vpop.f32.mrb[0].mxu0
    %v82 = vadd.f32 0.0, %v81
    %v83 = vpop.f32.mrb[0].mxu0
    %84 = vdwg.mxu0
    %v85 = vadd.f32 %v23, %v77
    %v86 = vadd.f32 %v24, %v82
    %vm87 = vcmask 261120
    %88 = vst.msk [vmem:[#allocation2] sm:$0xff] %vm87, %v85
    %89 = vst.msk [vmem:[#allocation2 + $0x8] sm:$0xff] %vm87, %v86
    // Predicated region
    $region18: #{graph_convolution.3} parent=1 // pred_check
      %p90 = pneg %p16
    $region19: #{graph_convolution.3} parent=1 // pred_check_branch
      %92 = sbr.rel (%p90) target = $region21
    $region20: #{graph_convolution.3} parent=1 // pred_region
      %v93 = vld [vmem:[#allocation2] sm:$0xff]
      %v94 = vld [vmem:[#allocation2 + $0x8] sm:$0xff]
      %v95 = vld [vmem:[%s2] sm:$0x1]
      %v97 = vlaneseq
      %v98 = vshrl.u32 %v97, 7
      %v99 = vsub.s32 0, %v98
      %v100 = vrot.slane %v95, %v99
      %v102 = vadd.f32 %v93, %v100
      %v103 = vadd.f32 %v94, %v100
      %104 = vst.msk [vmem:[#allocation3] sm:$0xff] %vm87, %v102
      %105 = vst.msk [vmem:[#allocation3 + $0x8] sm:$0xff] %vm87, %v103
    $region21: #{graph_convolution.3} parent=1 // pred_fallthru
      _
    // Predicated region
    $region22: #{graph_convolution.3} parent=1 // pred_check
      _
    $region23: #{graph_convolution.3} parent=1 // pred_check_branch
      %107 = sbr.rel (0) target = $region25
    $region24: #{graph_convolution.3} parent=1 // pred_region
      %s109 = ssub.s32 256, 256
      %110 = vsyncadd [#allocation4], %s109
      %s111 = sshll.u32 [#allocation3], 4
      %s112 = int_to_ptr.vmem [resolvable:$true] %s111
      %117 = dma.vmem_to_hbm [thread:$0]  %s112, 256, %s3, [#allocation4], 128, 128, 8
    $region25: #{graph_convolution.3} parent=1 // pred_fallthru
      _
    // Predicated region
    $region26: #{graph_convolution.3} parent=1 // pred_check
      _
    $region27: #{graph_convolution.3} parent=1 // pred_check_branch
      %119 = sbr.rel (0) target = $region29
    $region28: #{graph_convolution.3} parent=1 // pred_region
      %120 = dma.done [#allocation4], 256
    $region29: #{graph_convolution.3} parent=1 // pred_fallthru
      _
    %121 = vsyncpa [#allocation4], 1

</llo_original>
